<compile_context>
chip_gen: v7x
topology: tpu7x:2x2x1
jax: 0.10.0
libtpu: 0.0.40
codegen_flags: <defaults>
</compile_context>

<pallas_src>
import math
from functools import partial

import jax
import jax.numpy as jnp
from jax.experimental import pallas as pl
from jax.experimental.pallas import tpu as pltpu


def _gaussian_1d(k, s):
    """Normalized 1-D Gaussian taps (Python floats); handles the stdev==0 delta case."""
    c = k // 2
    g = []
    for i in range(k):
        if s > 0.0:
            g.append(math.exp(-0.5 * ((i - c) / s) ** 2))
        else:
            g.append(1.0 if abs(i - c) < 0.001 else 0.0)
    t = sum(g)
    return tuple(v / t for v in g)


def _blur_kernel(x_ref, o_ref, t_ref, acc_ref, *, wy, wx, H, W):
    """Separable depthwise Gaussian blur on a block of (bc, H, W) image planes.

    Zero "same" padding is realized with range-limited static slices (no padded
    copy, no extra HBM pass).  Horizontal pass (kw taps) -> t_ref (f32), vertical
    pass (kh taps) -> acc_ref (f32), single cast into o_ref at the end.  Casts are
    per-slice so no full-block f32 copy of the input stays live.
    """
    ph, pw = len(wy) // 2, len(wx) // 2

    # ---- horizontal pass: convolve along W (lane axis) into t_ref (f32) ----
    t_ref[...] = wx[pw] * x_ref[...].astype(jnp.float32)
    for d in range(1, pw + 1):
        w = wx[pw + d]                       # symmetric: wx[pw + d] == wx[pw - d]
        if w != 0.0 and d < W:               # skip zero taps (stdev == 0 delta)
            t_ref[:, :, : W - d] += w * x_ref[:, :, d:].astype(jnp.float32)
            t_ref[:, :, d:] += w * x_ref[:, :, : W - d].astype(jnp.float32)

    # ---- vertical pass: convolve along H (sublane axis) into acc_ref (f32) ----
    acc_ref[...] = wy[ph] * t_ref[...]
    for d in range(1, ph + 1):
        w = wy[ph + d]
        if w != 0.0 and d < H:
            acc_ref[:, : H - d, :] += w * t_ref[:, d:, :]
            acc_ref[:, d:, :] += w * t_ref[:, : H - d, :]

    o_ref[...] = acc_ref[...].astype(o_ref.dtype)


class GaussianBlur2d:
    """JAX/Pallas equivalent of the PyTorch GaussianBlur2d module (fixed weights)."""

    def __init__(self, c, kernel_size=5, stdev=1.0):
        if not isinstance(kernel_size, tuple):
            kernel_size = (kernel_size, kernel_size)
        if not isinstance(stdev, tuple):
            stdev = (stdev, stdev)
        assert kernel_size[0] % 2 == 1
        assert kernel_size[1] % 2 == 1
        assert min(kernel_size) > 1
        assert min(stdev) >= 0.0
        assert max(stdev) > 0.0
        self.c = c
        self.kernel_size = kernel_size
        self.stdev = stdev
        self.padding = (kernel_size[0] // 2, kernel_size[1] // 2)
        # The torch 2-D kernel is exactly outer(wy, wx) with each factor normalized.
        self.wy = _gaussian_1d(kernel_size[0], stdev[0])
        self.wx = _gaussian_1d(kernel_size[1], stdev[1])

    def __call__(self, x):
        B, C, H, W = x.shape
        assert C == self.c, f"expected {self.c} channels, got {C}"
        BC = B * C
        kh, kw = self.kernel_size
        dsize = jnp.dtype(x.dtype).itemsize

        # --- VMEM-budgeted block sizing (chip aware, conservative fallback) ---
        try:
            vmem_cap = pltpu.get_tpu_info().vmem_capacity_bytes
        except Exception:
            vmem_cap = 64 * 1024 * 1024          # assume smallest (v7x-sized) VMEM
        vmem_limit = int(min(vmem_cap // 2, 64 * 1024 * 1024))
        budget = (vmem_limit * 3) // 4           # headroom for compiler scratch
        # double-buffered input + output blocks, plus the two f32 VMEM scratches
        per_plane = 2 * 2 * H * W * dsize + 2 * H * W * 4
        max_bc = budget // per_plane
        if max_bc < 1:
            # TODO(synk): add H-tiling with a kh-1 halo for very large planes.
            raise NotImplementedError(
                f"single {H}x{W} plane exceeds the per-block VMEM budget")
        bc_blk = min(BC, int(max_bc))
        if BC >= 4:
            # Keep >= 4 grid steps so the 'parallel' axis shards across TensorCores
            # (v7x megacore) and the DMA pipeline has multiple stages to overlap.
            bc_blk = min(bc_blk, pl.cdiv(BC, 4))
        bc_blk = max(bc_blk, 1)
        grid = (pl.cdiv(BC, bc_blk),)

        # Free layout change only (contiguous reshape); no jnp.pad / no HBM round trip.
        x3 = x.reshape(BC, H, W)

        kern = partial(_blur_kernel, wy=self.wy, wx=self.wx, H=H, W=W)
        y = pl.pallas_call(
            kern,
            out_shape=jax.ShapeDtypeStruct((BC, H, W), x.dtype),
            grid=grid,
            in_specs=[pl.BlockSpec((bc_blk, H, W), lambda i: (i, 0, 0))],
            out_specs=pl.BlockSpec((bc_blk, H, W), lambda i: (i, 0, 0)),
            scratch_shapes=[
                pltpu.VMEM((bc_blk, H, W), jnp.float32),   # horizontal-pass result
                pltpu.VMEM((bc_blk, H, W), jnp.float32),   # f32 accumulator
            ],
            compiler_params=pltpu.CompilerParams(
                dimension_semantics=("parallel",),
                vmem_limit_bytes=vmem_limit,
            ),
            cost_estimate=pl.CostEstimate(
                flops=2 * (kh + kw) * BC * H * W,
                bytes_accessed=2 * BC * H * W * dsize,
                transcendentals=0,
            ),
        )(x3)
        return y.reshape(B, C, H, W)


def _reference(module, x):
    """Independent non-separable f32 reference (explicit pad + 2-D shift-and-add)."""
    wy = jnp.asarray(module.wy, jnp.float32)
    wx = jnp.asarray(module.wx, jnp.float32)
    w2d = jnp.outer(wy, wx)                     # == the torch module's normalized kernel
    ph, pw = module.padding
    kh, kw = module.kernel_size
    B, C, H, W = x.shape
    xp = jnp.pad(x.astype(jnp.float32), ((0, 0), (0, 0), (ph, ph), (pw, pw)))
    acc = jnp.zeros((B, C, H, W), jnp.float32)
    for dy in range(kh):
        for dx in range(kw):
            acc = acc + w2d[dy, dx] * xp[:, :, dy:dy + H, dx:dx + W]
    return acc.astype(x.dtype)


if __name__ == "__main__":
    key = jax.random.PRNGKey(0)
    B, C, H, W = 2, 4, 16, 16
    x = jax.random.normal(key, (B, C, H, W), dtype=jnp.float32)

    # Standard isotropic case + the stdev==0 (delta along one axis) degenerate case.
    for stdev in (1.0, (0.0, 1.5)):
        module = GaussianBlur2d(C, kernel_size=5, stdev=stdev)
        y = jax.block_until_ready(module(x))
        ref = _reference(module, x)
        assert y.shape == (B, C, H, W), y.shape
        assert y.dtype == x.dtype
        max_err = float(jnp.max(jnp.abs(y.astype(jnp.float32) - ref.astype(jnp.float32))))
        assert max_err < 1e-5, (stdev, max_err)

    print("KERNEL_OK")
</pallas_src>

<mosaic_0001>
module attributes {stable_mosaic.version = 11 : i64} {
  func.func @_blur_kernel(%arg0: i32, %arg1: memref<2x16x16xf32, #tpu.memory_space<vmem>>, %arg2: memref<2x16x16xf32, #tpu.memory_space<vmem>>, %arg3: memref<2x16x16xf32, #tpu.memory_space<vmem>>, %arg4: memref<2x16x16xf32, #tpu.memory_space<vmem>>) attributes {dimension_semantics = [#tpu.dimension_semantics<parallel>], iteration_bounds = array<i64: 4>, scalar_prefetch = 0 : i64, scratch_operands = 2 : i64, tpu.core_type = #tpu.core_type<tc>, window_params = [{transform_indices = @transform_0, window_bounds = array<i64: 2, 16, 16>}, {transform_indices = @transform_1, window_bounds = array<i64: 2, 16, 16>}]} {
    %c0 = arith.constant 0 : index
    %c0_0 = arith.constant 0 : index
    %c0_1 = arith.constant 0 : index
    %0 = vector.load %arg1[%c0, %c0_0, %c0_1] : memref<2x16x16xf32, #tpu.memory_space<vmem>>, vector<2x16x16xf32>
    %cst = arith.constant 0.402619958 : f32
    %1 = vector.broadcast %cst : f32 to vector<2x16x16xf32>
    %2 = arith.mulf %1, %0 : vector<2x16x16xf32>
    %c0_2 = arith.constant 0 : index
    %c0_3 = arith.constant 0 : index
    %c0_4 = arith.constant 0 : index
    %3 = vector.load %arg3[%c0_2, %c0_3, %c0_4] : memref<2x16x16xf32, #tpu.memory_space<vmem>>, vector<2x16x16xf32>
    tpu.vector_store %arg3[%c0_2, %c0_3, %c0_4], %2 {strides = array<i32>} : memref<2x16x16xf32, #tpu.memory_space<vmem>>, vector<2x16x16xf32>,
    %c0_5 = arith.constant 0 : index
    %c0_6 = arith.constant 0 : index
    %c0_7 = arith.constant 0 : index
    %4 = vector.load %arg3[%c0_5, %c0_6, %c0_7] : memref<2x16x16xf32, #tpu.memory_space<vmem>>, vector<2x16x15xf32>
    %c0_8 = arith.constant 0 : index
    %c0_9 = arith.constant 0 : index
    %c1 = arith.constant 1 : index
    %5 = vector.load %arg1[%c0_8, %c0_9, %c1] : memref<2x16x16xf32, #tpu.memory_space<vmem>>, vector<2x16x15xf32>
    %cst_10 = arith.constant 0.244201347 : f32
    %6 = vector.broadcast %cst_10 : f32 to vector<2x16x15xf32>
    %7 = arith.mulf %6, %5 : vector<2x16x15xf32>
    %8 = arith.addf %4, %7 : vector<2x16x15xf32>
    %c0_11 = arith.constant 0 : index
    %c0_12 = arith.constant 0 : index
    %c0_13 = arith.constant 0 : index
    %9 = vector.load %arg3[%c0_11, %c0_12, %c0_13] : memref<2x16x16xf32, #tpu.memory_space<vmem>>, vector<2x16x15xf32>
    tpu.vector_store %arg3[%c0_11, %c0_12, %c0_13], %8 {strides = array<i32>} : memref<2x16x16xf32, #tpu.memory_space<vmem>>, vector<2x16x15xf32>,
    %c0_14 = arith.constant 0 : index
    %c0_15 = arith.constant 0 : index
    %c1_16 = arith.constant 1 : index
    %10 = vector.load %arg3[%c0_14, %c0_15, %c1_16] : memref<2x16x16xf32, #tpu.memory_space<vmem>>, vector<2x16x15xf32>
    %c0_17 = arith.constant 0 : index
    %c0_18 = arith.constant 0 : index
    %c0_19 = arith.constant 0 : index
    %11 = vector.load %arg1[%c0_17, %c0_18, %c0_19] : memref<2x16x16xf32, #tpu.memory_space<vmem>>, vector<2x16x15xf32>
    %cst_20 = arith.constant 0.244201347 : f32
    %12 = vector.broadcast %cst_20 : f32 to vector<2x16x15xf32>
    %13 = arith.mulf %12, %11 : vector<2x16x15xf32>
    %14 = arith.addf %10, %13 : vector<2x16x15xf32>
    %c0_21 = arith.constant 0 : index
    %c0_22 = arith.constant 0 : index
    %c1_23 = arith.constant 1 : index
    %15 = vector.load %arg3[%c0_21, %c0_22, %c1_23] : memref<2x16x16xf32, #tpu.memory_space<vmem>>, vector<2x16x15xf32>
    tpu.vector_store %arg3[%c0_21, %c0_22, %c1_23], %14 {strides = array<i32>} : memref<2x16x16xf32, #tpu.memory_space<vmem>>, vector<2x16x15xf32>,
    %c0_24 = arith.constant 0 : index
    %c0_25 = arith.constant 0 : index
    %c0_26 = arith.constant 0 : index
    %16 = vector.load %arg3[%c0_24, %c0_25, %c0_26] : memref<2x16x16xf32, #tpu.memory_space<vmem>>, vector<2x16x14xf32>
    %c0_27 = arith.constant 0 : index
    %c0_28 = arith.constant 0 : index
    %c2 = arith.constant 2 : index
    %17 = vector.load %arg1[%c0_27, %c0_28, %c2] : memref<2x16x16xf32, #tpu.memory_space<vmem>>, vector<2x16x14xf32>
    %cst_29 = arith.constant 0.054488685 : f32
    %18 = vector.broadcast %cst_29 : f32 to vector<2x16x14xf32>
    %19 = arith.mulf %18, %17 : vector<2x16x14xf32>
    %20 = arith.addf %16, %19 : vector<2x16x14xf32>
    %c0_30 = arith.constant 0 : index
    %c0_31 = arith.constant 0 : index
    %c0_32 = arith.constant 0 : index
    %21 = vector.load %arg3[%c0_30, %c0_31, %c0_32] : memref<2x16x16xf32, #tpu.memory_space<vmem>>, vector<2x16x14xf32>
    tpu.vector_store %arg3[%c0_30, %c0_31, %c0_32], %20 {strides = array<i32>} : memref<2x16x16xf32, #tpu.memory_space<vmem>>, vector<2x16x14xf32>,
    %c0_33 = arith.constant 0 : index
    %c0_34 = arith.constant 0 : index
    %c2_35 = arith.constant 2 : index
    %22 = vector.load %arg3[%c0_33, %c0_34, %c2_35] : memref<2x16x16xf32, #tpu.memory_space<vmem>>, vector<2x16x14xf32>
    %c0_36 = arith.constant 0 : index
    %c0_37 = arith.constant 0 : index
    %c0_38 = arith.constant 0 : index
    %23 = vector.load %arg1[%c0_36, %c0_37, %c0_38] : memref<2x16x16xf32, #tpu.memory_space<vmem>>, vector<2x16x14xf32>
    %cst_39 = arith.constant 0.054488685 : f32
    %24 = vector.broadcast %cst_39 : f32 to vector<2x16x14xf32>
    %25 = arith.mulf %24, %23 : vector<2x16x14xf32>
    %26 = arith.addf %22, %25 : vector<2x16x14xf32>
    %c0_40 = arith.constant 0 : index
    %c0_41 = arith.constant 0 : index
    %c2_42 = arith.constant 2 : index
    %27 = vector.load %arg3[%c0_40, %c0_41, %c2_42] : memref<2x16x16xf32, #tpu.memory_space<vmem>>, vector<2x16x14xf32>
    tpu.vector_store %arg3[%c0_40, %c0_41, %c2_42], %26 {strides = array<i32>} : memref<2x16x16xf32, #tpu.memory_space<vmem>>, vector<2x16x14xf32>,
    %c0_43 = arith.constant 0 : index
    %c0_44 = arith.constant 0 : index
    %c0_45 = arith.constant 0 : index
    %28 = vector.load %arg3[%c0_43, %c0_44, %c0_45] : memref<2x16x16xf32, #tpu.memory_space<vmem>>, vector<2x16x16xf32>
    %cst_46 = arith.constant 0.402619958 : f32
    %29 = vector.broadcast %cst_46 : f32 to vector<2x16x16xf32>
    %30 = arith.mulf %29, %28 : vector<2x16x16xf32>
    %c0_47 = arith.constant 0 : index
    %c0_48 = arith.constant 0 : index
    %c0_49 = arith.constant 0 : index
    %31 = vector.load %arg4[%c0_47, %c0_48, %c0_49] : memref<2x16x16xf32, #tpu.memory_space<vmem>>, vector<2x16x16xf32>
    tpu.vector_store %arg4[%c0_47, %c0_48, %c0_49], %30 {strides = array<i32>} : memref<2x16x16xf32, #tpu.memory_space<vmem>>, vector<2x16x16xf32>,
    %c0_50 = arith.constant 0 : index
    %c0_51 = arith.constant 0 : index
    %c0_52 = arith.constant 0 : index
    %32 = vector.load %arg4[%c0_50, %c0_51, %c0_52] : memref<2x16x16xf32, #tpu.memory_space<vmem>>, vector<2x15x16xf32>
    %c0_53 = arith.constant 0 : index
    %c1_54 = arith.constant 1 : index
    %c0_55 = arith.constant 0 : index
    %33 = vector.load %arg3[%c0_53, %c1_54, %c0_55] : memref<2x16x16xf32, #tpu.memory_space<vmem>>, vector<2x15x16xf32>
    %cst_56 = arith.constant 0.244201347 : f32
    %34 = vector.broadcast %cst_56 : f32 to vector<2x15x16xf32>
    %35 = arith.mulf %34, %33 : vector<2x15x16xf32>
    %36 = arith.addf %32, %35 : vector<2x15x16xf32>
    %c0_57 = arith.constant 0 : index
    %c0_58 = arith.constant 0 : index
    %c0_59 = arith.constant 0 : index
    %37 = vector.load %arg4[%c0_57, %c0_58, %c0_59] : memref<2x16x16xf32, #tpu.memory_space<vmem>>, vector<2x15x16xf32>
    tpu.vector_store %arg4[%c0_57, %c0_58, %c0_59], %36 {strides = array<i32>} : memref<2x16x16xf32, #tpu.memory_space<vmem>>, vector<2x15x16xf32>,
    %c0_60 = arith.constant 0 : index
    %c1_61 = arith.constant 1 : index
    %c0_62 = arith.constant 0 : index
    %38 = vector.load %arg4[%c0_60, %c1_61, %c0_62] : memref<2x16x16xf32, #tpu.memory_space<vmem>>, vector<2x15x16xf32>
    %c0_63 = arith.constant 0 : index
    %c0_64 = arith.constant 0 : index
    %c0_65 = arith.constant 0 : index
    %39 = vector.load %arg3[%c0_63, %c0_64, %c0_65] : memref<2x16x16xf32, #tpu.memory_space<vmem>>, vector<2x15x16xf32>
    %cst_66 = arith.constant 0.244201347 : f32
    %40 = vector.broadcast %cst_66 : f32 to vector<2x15x16xf32>
    %41 = arith.mulf %40, %39 : vector<2x15x16xf32>
    %42 = arith.addf %38, %41 : vector<2x15x16xf32>
    %c0_67 = arith.constant 0 : index
    %c1_68 = arith.constant 1 : index
    %c0_69 = arith.constant 0 : index
    %43 = vector.load %arg4[%c0_67, %c1_68, %c0_69] : memref<2x16x16xf32, #tpu.memory_space<vmem>>, vector<2x15x16xf32>
    tpu.vector_store %arg4[%c0_67, %c1_68, %c0_69], %42 {strides = array<i32>} : memref<2x16x16xf32, #tpu.memory_space<vmem>>, vector<2x15x16xf32>,
    %c0_70 = arith.constant 0 : index
    %c0_71 = arith.constant 0 : index
    %c0_72 = arith.constant 0 : index
    %44 = vector.load %arg4[%c0_70, %c0_71, %c0_72] : memref<2x16x16xf32, #tpu.memory_space<vmem>>, vector<2x14x16xf32>
    %c0_73 = arith.constant 0 : index
    %c2_74 = arith.constant 2 : index
    %c0_75 = arith.constant 0 : index
    %45 = vector.load %arg3[%c0_73, %c2_74, %c0_75] : memref<2x16x16xf32, #tpu.memory_space<vmem>>, vector<2x14x16xf32>
    %cst_76 = arith.constant 0.054488685 : f32
    %46 = vector.broadcast %cst_76 : f32 to vector<2x14x16xf32>
    %47 = arith.mulf %46, %45 : vector<2x14x16xf32>
    %48 = arith.addf %44, %47 : vector<2x14x16xf32>
    %c0_77 = arith.constant 0 : index
    %c0_78 = arith.constant 0 : index
    %c0_79 = arith.constant 0 : index
    %49 = vector.load %arg4[%c0_77, %c0_78, %c0_79] : memref<2x16x16xf32, #tpu.memory_space<vmem>>, vector<2x14x16xf32>
    tpu.vector_store %arg4[%c0_77, %c0_78, %c0_79], %48 {strides = array<i32>} : memref<2x16x16xf32, #tpu.memory_space<vmem>>, vector<2x14x16xf32>,
    %c0_80 = arith.constant 0 : index
    %c2_81 = arith.constant 2 : index
    %c0_82 = arith.constant 0 : index
    %50 = vector.load %arg4[%c0_80, %c2_81, %c0_82] : memref<2x16x16xf32, #tpu.memory_space<vmem>>, vector<2x14x16xf32>
    %c0_83 = arith.constant 0 : index
    %c0_84 = arith.constant 0 : index
    %c0_85 = arith.constant 0 : index
    %51 = vector.load %arg3[%c0_83, %c0_84, %c0_85] : memref<2x16x16xf32, #tpu.memory_space<vmem>>, vector<2x14x16xf32>
    %cst_86 = arith.constant 0.054488685 : f32
    %52 = vector.broadcast %cst_86 : f32 to vector<2x14x16xf32>
    %53 = arith.mulf %52, %51 : vector<2x14x16xf32>
    %54 = arith.addf %50, %53 : vector<2x14x16xf32>
    %c0_87 = arith.constant 0 : index
    %c2_88 = arith.constant 2 : index
    %c0_89 = arith.constant 0 : index
    %55 = vector.load %arg4[%c0_87, %c2_88, %c0_89] : memref<2x16x16xf32, #tpu.memory_space<vmem>>, vector<2x14x16xf32>
    tpu.vector_store %arg4[%c0_87, %c2_88, %c0_89], %54 {strides = array<i32>} : memref<2x16x16xf32, #tpu.memory_space<vmem>>, vector<2x14x16xf32>,
    %c0_90 = arith.constant 0 : index
    %c0_91 = arith.constant 0 : index
    %c0_92 = arith.constant 0 : index
    %56 = vector.load %arg4[%c0_90, %c0_91, %c0_92] : memref<2x16x16xf32, #tpu.memory_space<vmem>>, vector<2x16x16xf32>
    %c0_93 = arith.constant 0 : index
    %c0_94 = arith.constant 0 : index
    %c0_95 = arith.constant 0 : index
    %57 = vector.load %arg2[%c0_93, %c0_94, %c0_95] : memref<2x16x16xf32, #tpu.memory_space<vmem>>, vector<2x16x16xf32>
    tpu.vector_store %arg2[%c0_93, %c0_94, %c0_95], %56 {strides = array<i32>} : memref<2x16x16xf32, #tpu.memory_space<vmem>>, vector<2x16x16xf32>,
    return
  }
  func.func @transform_0(%arg0: i32) -> (i32, i32, i32) {
    %c0_i32 = arith.constant 0 : i32
    %c0_i32_0 = arith.constant 0 : i32
    %c0_i32_1 = arith.constant 0 : i32
    return %arg0, %c0_i32, %c0_i32_0 : i32, i32, i32
  }
  func.func @transform_1(%arg0: i32) -> (i32, i32, i32) {
    %c0_i32 = arith.constant 0 : i32
    %c0_i32_0 = arith.constant 0 : i32
    %c0_i32_1 = arith.constant 0 : i32
    return %arg0, %c0_i32, %c0_i32_0 : i32, i32, i32
  }
}

</mosaic_0001>

<llo_original>
// kernel: tpu_custom_call.1
$region0: #{tpu_custom_call.1}
  #allocation0 [shape = 'u32[]', space=smem, size = 0x4, offset = 0x4, fixed_abs, tag = 'smem constant byte address 0x4 - core index']
  #allocation1 [shape = 'u32[144,128]{1,0:T(1,128)}', space=vmem, size = 0x12000, scoped, tag = 'internal scratch']
  #allocation2 [shape = 'f32[2,16,16]{2,1,0:T(8,128)}', space=vmem, size = 0x4000, scoped, tag = 'scratch operand']
  #allocation3 [shape = 'f32[2,16,16]{2,1,0:T(8,128)}', space=vmem, size = 0x4000, scoped, tag = 'scratch operand']
  %s0 = inlined_call_operand.hbm [shape: f32[8,16,16], index: 0, kind: input, shape index: {}]
  %s1 = inlined_call_operand.hbm [shape: f32[8,16,16], index: 1, kind: output, shape index: {}]
  %s2 = sld [smem:[#allocation0]]
  $region41: #{tpu_custom_call.1} parent=0
    _
  %s4 = ssub.s32 1, %s2
  %s5 = scalar_select 0, %s4, %s2
  $region1: #{tpu_custom_call.1} parent=0
    #allocation4 [shape = 'u8[32768]{0}', space=vmem, size = 0x8000, scoped, tag = 'input window, operand 0']
    #allocation5 [shape = 's32[2]{0}', space=sflag, size = 0x8, scoped, tag = 'scoped memory for tpu_custom_call.1']
    #allocation6 [shape = 's32[2]{0}', space=sflag, size = 0x8, scoped, tag = 'scoped memory for tpu_custom_call.1']
    #allocation7 [shape = 'u8[32768]{0}', space=vmem, size = 0x8000, scoped, tag = 'output window, operand 0']
    %6 = vsyncpa [#allocation5], 0
    %s7 = scalar_lea.sflag [#allocation5], 1
    %8 = vsyncpa %s7, 0
    %9 = vsyncpa [#allocation6], 0
    %s10 = scalar_lea.sflag [#allocation6], 1
    %11 = vsyncpa %s10, 0
    loop: start=0, step=1, limit=6
    $region2: #{tpu_custom_call.1} parent=1 // loop_pre_header
      _
    $region3: #{tpu_custom_call.1} parent=1 // loop_header
      %s13 = sphi 0, %s17
      %p14 = scmp.ge.s32.totalorder %s13, 6
      %s23 = sphi 0, %s25
      %s26 = sphi 0, %s23
      %s27 = sphi 0, %s26
      %s43 = sphi 0, %s27
      %s49 = sphi 0, %s51
      %s52 = sphi 0, %s49
      %s53 = sphi 0, %s52
      %s69 = sphi 0, %s53
    $region4: #{tpu_custom_call.1} parent=1 // loop_header_branch
      %16 = sbr.rel (%p14) target = $region8
    $region5: #{tpu_custom_call.1} parent=1 // loop_body
      %s18 = ssub.s32 %s13, 1
      %s19 = ssub.s32 %s13, 2
      %s20 = sadd.s32 %s13, 1
      %s21 = ssub.s32 %s13, %s20
      %p22 = scmp.eq.s32.totalorder %s21, 0
      %s24 = sadd.s32 %s23, 1
      %s25 = scalar_select %p22, %s23, %s24
      %p28 = pneg %p22
      %p29 = scmp.eq.s32.totalorder %s13, 3
      %p30 = por %p28, %p29
      %p31 = scmp.ne.s32.totalorder %s23, %s26
      %p32 = scmp.eq.s32.totalorder %s13, 0
      %p33 = por %p31, %p32
      %p34 = scmp.ne.s32.totalorder %s23, %s26
      %p35 = scmp.eq.s32.totalorder %s18, 3
      %p36 = por %p34, %p35
      %p37 = scmp.ne.s32.totalorder %s26, %s27
      %p38 = scmp.eq.s32.totalorder %s18, 0
      %p39 = por %p37, %p38
      %p40 = scmp.ne.s32.totalorder %s26, %s27
      %p41 = scmp.eq.s32.totalorder %s19, 3
      %p42 = por %p40, %p41
      %p44 = scmp.ne.s32.totalorder %s27, %s43
      %p45 = scmp.eq.s32.totalorder %s19, 0
      %p46 = por %p44, %p45
      %s47 = ssub.s32 %s13, %s20
      %p48 = scmp.eq.s32.totalorder %s47, 0
      %s50 = sadd.s32 %s49, 1
      %s51 = scalar_select %p48, %s49, %s50
      %p54 = pneg %p48
      %p55 = scmp.eq.s32.totalorder %s13, 3
      %p56 = por %p54, %p55
      %p57 = scmp.ne.s32.totalorder %s49, %s52
      %p58 = scmp.eq.s32.totalorder %s13, 0
      %p59 = por %p57, %p58
      %p60 = scmp.ne.s32.totalorder %s49, %s52
      %p61 = scmp.eq.s32.totalorder %s18, 3
      %p62 = por %p60, %p61
      %p63 = scmp.ne.s32.totalorder %s52, %s53
      %p64 = scmp.eq.s32.totalorder %s18, 0
      %p65 = por %p63, %p64
      %p66 = scmp.ne.s32.totalorder %s52, %s53
      %p67 = scmp.eq.s32.totalorder %s19, 3
      %p68 = por %p66, %p67
      %p70 = scmp.ne.s32.totalorder %s53, %s69
      %p71 = scmp.eq.s32.totalorder %s19, 0
      %p72 = por %p70, %p71
      %p73 = scmp.le.s32.totalorder 1, %s13
      %p74 = scmp.lt.s32.totalorder %s13, 5
      %p75 = pnand %p73, %p74
      %p76 = pneg %p75
      // Predicated region
      $region9: #{tpu_custom_call.1} parent=5 // pred_check
        _
      $region10: #{tpu_custom_call.1} parent=5 // pred_check_branch
        %78 = sbr.rel (%p75) target = $region12
      $region11: #{tpu_custom_call.1} parent=5 // pred_region
        %s79 = ssub.s32 %s13, 1
      $region12: #{tpu_custom_call.1} parent=5 // pred_fallthru
        _
      %p80 = scmp.lt.s32.totalorder %s13, 4
      // Predicated region
      $region13: #{tpu_custom_call.1} parent=5 // pred_check
        %p81 = pneg %p80
      $region14: #{tpu_custom_call.1} parent=5 // pred_check_branch
        %83 = sbr.rel (%p81) target = $region16
      $region15: #{tpu_custom_call.1} parent=5 // pred_region
        // Predicated region
        $region17: #{tpu_custom_call.1} parent=15 // pred_check
          %p84 = pneg %p33
        $region18: #{tpu_custom_call.1} parent=15 // pred_check_branch
          %86 = sbr.rel (%p84) target = $region20
        $region19: #{tpu_custom_call.1} parent=15 // pred_region
          %s87 = sand.u32 %s23, 1
          %s88 = scalar_lea.sflag [#allocation5], %s87
          %s89 = sand.u32 %s23, 1
          %s90 = smul.addr %s89, 32
          %s91 = scalar_lea.vmem [#allocation4], %s90
          %s92 = smul.u32 2, %s13
          %s94 = ssub.s32 512, 512
          %95 = vsyncadd %s88, %s94
          %s96 = smul.addr %s92, 2
          %s97 = smul.addr %s96, 128
          %s98 = scalar_lea.hbm %s0, %s97
          %s99 = sshll.u32 %s91, 4
          %s100 = int_to_ptr.vmem [resolvable:$true] %s99
          %105 = dma.hbm_to_vmem [thread:$0]  %s98, 512, %s100, %s88, 128, 128, 8
        $region20: #{tpu_custom_call.1} parent=15 // pred_fallthru
          _
      $region16: #{tpu_custom_call.1} parent=5 // pred_fallthru
        _
      %p106 = scmp.le.s32.totalorder 1, %s13
      %p107 = scmp.lt.s32.totalorder %s13, 5
      %p108 = pnand %p106, %p107
      %p109 = pneg %p108
      // Predicated region
      $region21: #{tpu_custom_call.1} parent=5 // pred_check
        _
      $region22: #{tpu_custom_call.1} parent=5 // pred_check_branch
        %111 = sbr.rel (%p108) target = $region24
      $region23: #{tpu_custom_call.1} parent=5 // pred_region
        %s112 = ssub.s32 %s13, 1
        %s113 = sand.u32 %s26, 1
        %s114 = scalar_lea.sflag [#allocation5], %s113
        %s115 = sand.u32 %s26, 1
        %s116 = smul.addr %s115, 32
        %s117 = scalar_lea.vmem [#allocation4], %s116
        // Predicated region
        $region25: #{tpu_custom_call.1} parent=23 // pred_check
          %p118 = pneg %p39
        $region26: #{tpu_custom_call.1} parent=23 // pred_check_branch
          %120 = sbr.rel (%p118) target = $region28
        $region27: #{tpu_custom_call.1} parent=23 // pred_region
          %121 = dma.done %s114, 512
        $region28: #{tpu_custom_call.1} parent=23 // pred_fallthru
          _
        %s122 = sand.u32 %s26, 1
        %s123 = scalar_lea.sflag [#allocation5], %s122
        %s124 = sand.u32 %s26, 1
        %s125 = smul.addr %s124, 32
        %s126 = scalar_lea.vmem [#allocation4], %s125
        %p127 = pneg %p39
        %p128 = pneg %p36
        %p129 = pneg %p65
        %p130 = pneg %p62
        %s131 = sand.u32 %s52, 1
        %s132 = scalar_lea.sflag [#allocation6], %s131
        %s133 = sand.u32 %s52, 1
        %s134 = smul.addr %s133, 32
        %s135 = scalar_lea.vmem [#allocation7], %s134
        %s136 = smul.u32 2, %s18
        %s137 = smul.u32 2, %s18
        %v138 = vld [vmem:[%s117] sm:$0xff]
        %v139 = vld [vmem:[%s117 + $0x8] sm:$0xff]
        %v140 = vld [vmem:[%s117 + $0x10] sm:$0xff]
        %v141 = vld [vmem:[%s117 + $0x18] sm:$0xff]
        %v142 = vmul.f32 %v138, 0.40261996
        %v143 = vmul.f32 %v139, 0.40261996
        %v144 = vmul.f32 %v140, 0.40261996
        %v145 = vmul.f32 %v141, 0.40261996
        %vm146 = vcmask 130048
        %147 = vst.msk [vmem:[#allocation2] sm:$0xff] %vm146, %v142
        %148 = vst.msk [vmem:[#allocation2 + $0x8] sm:$0xff] %vm146, %v143
        %149 = vst.msk [vmem:[#allocation2 + $0x10] sm:$0xff] %vm146, %v144
        %150 = vst.msk [vmem:[#allocation2 + $0x18] sm:$0xff] %vm146, %v145
        %v151 = vld [vmem:[#allocation2] sm:$0xff]
        %v152 = vld [vmem:[#allocation2 + $0x8] sm:$0xff]
        %v153 = vld [vmem:[#allocation2 + $0x10] sm:$0xff]
        %v154 = vld [vmem:[#allocation2 + $0x18] sm:$0xff]
        %v155 = vld [vmem:[%s117] sm:$0xff]
        %v156 = vld [vmem:[%s117 + $0x8] sm:$0xff]
        %v157 = vld [vmem:[%s117 + $0x10] sm:$0xff]
        %v158 = vld [vmem:[%s117 + $0x18] sm:$0xff]
        %v159 = vmul.f32 %v155, 0.24420135
        %v160 = vmul.f32 %v156, 0.24420135
        %v161 = vmul.f32 %v157, 0.24420135
        %v162 = vmul.f32 %v158, 0.24420135
        %167 = vrot.lane.b32.xlu0 %v159, 127
        %v168 = vpop.permute.xlu0 %167
        %169 = vrot.lane.b32.xlu0 %v160, 127
        %v170 = vpop.permute.xlu0 %169
        %171 = vrot.lane.b32.xlu0 %v161, 127
        %v172 = vpop.permute.xlu0 %171
        %173 = vrot.lane.b32.xlu0 %v162, 127
        %v174 = vpop.permute.xlu0 %173
        %v179 = vadd.f32 %v151, %v168
        %v180 = vadd.f32 %v152, %v170
        %v181 = vadd.f32 %v153, %v172
        %v182 = vadd.f32 %v154, %v174
        %vm183 = vcmask 121856
        %184 = vst.msk [vmem:[#allocation2] sm:$0xff] %vm183, %v179
        %185 = vst.msk [vmem:[#allocation2 + $0x8] sm:$0xff] %vm183, %v180
        %186 = vst.msk [vmem:[#allocation2 + $0x10] sm:$0xff] %vm183, %v181
        %187 = vst.msk [vmem:[#allocation2 + $0x18] sm:$0xff] %vm183, %v182
        %v188 = vld [vmem:[#allocation2] sm:$0xff]
        %v189 = vld [vmem:[#allocation2 + $0x8] sm:$0xff]
        %v190 = vld [vmem:[#allocation2 + $0x10] sm:$0xff]
        %v191 = vld [vmem:[#allocation2 + $0x18] sm:$0xff]
        %v192 = vld [vmem:[%s117] sm:$0xff]
        %v193 = vld [vmem:[%s117 + $0x8] sm:$0xff]
        %v194 = vld [vmem:[%s117 + $0x10] sm:$0xff]
        %v195 = vld [vmem:[%s117 + $0x18] sm:$0xff]
        %v196 = vmul.f32 %v192, 0.24420135
        %v197 = vmul.f32 %v193, 0.24420135
        %v198 = vmul.f32 %v194, 0.24420135
        %v199 = vmul.f32 %v195, 0.24420135
        %204 = vrot.lane.b32.xlu0 %v196, 1
        %v205 = vpop.permute.xlu0 %204
        %206 = vrot.lane.b32.xlu0 %v197, 1
        %v207 = vpop.permute.xlu0 %206
        %208 = vrot.lane.b32.xlu0 %v198, 1
        %v209 = vpop.permute.xlu0 %208
        %210 = vrot.lane.b32.xlu0 %v199, 1
        %v211 = vpop.permute.xlu0 %210
        %v216 = vadd.f32 %v188, %v205
        %v217 = vadd.f32 %v189, %v207
        %v218 = vadd.f32 %v190, %v209
        %v219 = vadd.f32 %v191, %v211
        %vm220 = vcmask 130056
        %221 = vst.msk [vmem:[#allocation2] sm:$0xff] %vm220, %v216
        %222 = vst.msk [vmem:[#allocation2 + $0x8] sm:$0xff] %vm220, %v217
        %223 = vst.msk [vmem:[#allocation2 + $0x10] sm:$0xff] %vm220, %v218
        %224 = vst.msk [vmem:[#allocation2 + $0x18] sm:$0xff] %vm220, %v219
        %v225 = vld [vmem:[#allocation2] sm:$0xff]
        %v226 = vld [vmem:[#allocation2 + $0x8] sm:$0xff]
        %v227 = vld [vmem:[#allocation2 + $0x10] sm:$0xff]
        %v228 = vld [vmem:[#allocation2 + $0x18] sm:$0xff]
        %v229 = vld [vmem:[%s117] sm:$0xff]
        %v230 = vld [vmem:[%s117 + $0x8] sm:$0xff]
        %v231 = vld [vmem:[%s117 + $0x10] sm:$0xff]
        %v232 = vld [vmem:[%s117 + $0x18] sm:$0xff]
        %v233 = vmul.f32 %v229, 0.054488685
        %v234 = vmul.f32 %v230, 0.054488685
        %v235 = vmul.f32 %v231, 0.054488685
        %v236 = vmul.f32 %v232, 0.054488685
        %241 = vrot.lane.b32.xlu0 %v233, 126
        %v242 = vpop.permute.xlu0 %241
        %243 = vrot.lane.b32.xlu0 %v234, 126
        %v244 = vpop.permute.xlu0 %243
        %245 = vrot.lane.b32.xlu0 %v235, 126
        %v246 = vpop.permute.xlu0 %245
        %247 = vrot.lane.b32.xlu0 %v236, 126
        %v248 = vpop.permute.xlu0 %247
        %v253 = vadd.f32 %v225, %v242
        %v254 = vadd.f32 %v226, %v244
        %v255 = vadd.f32 %v227, %v246
        %v256 = vadd.f32 %v228, %v248
        %vm257 = vcmask 113664
        %258 = vst.msk [vmem:[#allocation2] sm:$0xff] %vm257, %v253
        %259 = vst.msk [vmem:[#allocation2 + $0x8] sm:$0xff] %vm257, %v254
        %260 = vst.msk [vmem:[#allocation2 + $0x10] sm:$0xff] %vm257, %v255
        %261 = vst.msk [vmem:[#allocation2 + $0x18] sm:$0xff] %vm257, %v256
        %v262 = vld [vmem:[#allocation2] sm:$0xff]
        %v263 = vld [vmem:[#allocation2 + $0x8] sm:$0xff]
        %v264 = vld [vmem:[#allocation2 + $0x10] sm:$0xff]
        %v265 = vld [vmem:[#allocation2 + $0x18] sm:$0xff]
        %v266 = vld [vmem:[%s117] sm:$0xff]
        %v267 = vld [vmem:[%s117 + $0x8] sm:$0xff]
        %v268 = vld [vmem:[%s117 + $0x10] sm:$0xff]
        %v269 = vld [vmem:[%s117 + $0x18] sm:$0xff]
        %v270 = vmul.f32 %v266, 0.054488685
        %v271 = vmul.f32 %v267, 0.054488685
        %v272 = vmul.f32 %v268, 0.054488685
        %v273 = vmul.f32 %v269, 0.054488685
        %278 = vrot.lane.b32.xlu0 %v270, 2
        %v279 = vpop.permute.xlu0 %278
        %280 = vrot.lane.b32.xlu0 %v271, 2
        %v281 = vpop.permute.xlu0 %280
        %282 = vrot.lane.b32.xlu0 %v272, 2
        %v283 = vpop.permute.xlu0 %282
        %284 = vrot.lane.b32.xlu0 %v273, 2
        %v285 = vpop.permute.xlu0 %284
        %v290 = vadd.f32 %v262, %v279
        %v291 = vadd.f32 %v263, %v281
        %v292 = vadd.f32 %v264, %v283
        %v293 = vadd.f32 %v265, %v285
        %vm294 = vcmask 130064
        %295 = vst.msk [vmem:[#allocation2] sm:$0xff] %vm294, %v290
        %296 = vst.msk [vmem:[#allocation2 + $0x8] sm:$0xff] %vm294, %v291
        %297 = vst.msk [vmem:[#allocation2 + $0x10] sm:$0xff] %vm294, %v292
        %298 = vst.msk [vmem:[#allocation2 + $0x18] sm:$0xff] %vm294, %v293
        %v299 = vld [vmem:[#allocation2] sm:$0xff]
        %v300 = vld [vmem:[#allocation2 + $0x8] sm:$0xff]
        %v301 = vld [vmem:[#allocation2 + $0x10] sm:$0xff]
        %v302 = vld [vmem:[#allocation2 + $0x18] sm:$0xff]
        %v303 = vmul.f32 %v299, 0.40261996
        %v304 = vmul.f32 %v300, 0.40261996
        %v305 = vmul.f32 %v301, 0.40261996
        %v306 = vmul.f32 %v302, 0.40261996
        %307 = vst.msk [vmem:[#allocation3] sm:$0xff] %vm146, %v303
        %308 = vst.msk [vmem:[#allocation3 + $0x8] sm:$0xff] %vm146, %v304
        %309 = vst.msk [vmem:[#allocation3 + $0x10] sm:$0xff] %vm146, %v305
        %310 = vst.msk [vmem:[#allocation3 + $0x18] sm:$0xff] %vm146, %v306
        %v311 = vld [vmem:[#allocation3] sm:$0xff]
        %v312 = vld [vmem:[#allocation3 + $0x8] sm:$0x7f]
        %v313 = vld [vmem:[#allocation3 + $0x10] sm:$0xff]
        %v314 = vld [vmem:[#allocation3 + $0x18] sm:$0x7f]
        %v315 = vld [vmem:[#allocation2 + $0x1] sm:$0xff]
        %v316 = vld [vmem:[#allocation2 + $0x9] sm:$0x7f]
        %v317 = vld [vmem:[#allocation2 + $0x11] sm:$0xff]
        %v318 = vld [vmem:[#allocation2 + $0x19] sm:$0x7f]
        %v319 = vmul.f32 %v315, 0.24420135
        %v320 = vmul.f32 %v316, 0.24420135
        %v321 = vmul.f32 %v317, 0.24420135
        %v322 = vmul.f32 %v318, 0.24420135
        %v323 = vadd.f32 %v311, %v319
        %v324 = vadd.f32 %v312, %v320
        %v325 = vadd.f32 %v313, %v321
        %v326 = vadd.f32 %v314, %v322
        %327 = vst.msk [vmem:[#allocation3] sm:$0xff] %vm146, %v323
        %vm328 = vcmask 129024
        %329 = vst.msk [vmem:[#allocation3 + $0x8] sm:$0x7f] %vm328, %v324
        %330 = vst.msk [vmem:[#allocation3 + $0x10] sm:$0xff] %vm146, %v325
        %331 = vst.msk [vmem:[#allocation3 + $0x18] sm:$0x7f] %vm328, %v326
        %v332 = vld [vmem:[#allocation3 + $0x1] sm:$0xff]
        %v333 = vld [vmem:[#allocation3 + $0x9] sm:$0x7f]
        %v334 = vld [vmem:[#allocation3 + $0x11] sm:$0xff]
        %v335 = vld [vmem:[#allocation3 + $0x19] sm:$0x7f]
        %v336 = vld [vmem:[#allocation2] sm:$0xff]
        %v337 = vld [vmem:[#allocation2 + $0x8] sm:$0x7f]
        %v338 = vld [vmem:[#allocation2 + $0x10] sm:$0xff]
        %v339 = vld [vmem:[#allocation2 + $0x18] sm:$0x7f]
        %v340 = vmul.f32 %v336, 0.24420135
        %v341 = vmul.f32 %v337, 0.24420135
        %v342 = vmul.f32 %v338, 0.24420135
        %v343 = vmul.f32 %v339, 0.24420135
        %v344 = vadd.f32 %v332, %v340
        %v345 = vadd.f32 %v333, %v341
        %v346 = vadd.f32 %v334, %v342
        %v347 = vadd.f32 %v335, %v343
        %348 = vst.msk [vmem:[#allocation3 + $0x1] sm:$0xff] %vm146, %v344
        %349 = vst.msk [vmem:[#allocation3 + $0x9] sm:$0x7f] %vm328, %v345
        %350 = vst.msk [vmem:[#allocation3 + $0x11] sm:$0xff] %vm146, %v346
        %351 = vst.msk [vmem:[#allocation3 + $0x19] sm:$0x7f] %vm328, %v347
        %v352 = vld [vmem:[#allocation3] sm:$0xff]
        %v353 = vld [vmem:[#allocation3 + $0x8] sm:$0x3f]
        %v354 = vld [vmem:[#allocation3 + $0x10] sm:$0xff]
        %v355 = vld [vmem:[#allocation3 + $0x18] sm:$0x3f]
        %v356 = vld [vmem:[#allocation2 + $0x2] sm:$0xff]
        %v357 = vld [vmem:[#allocation2 + $0xa] sm:$0x3f]
        %v358 = vld [vmem:[#allocation2 + $0x12] sm:$0xff]
        %v359 = vld [vmem:[#allocation2 + $0x1a] sm:$0x3f]
        %v360 = vmul.f32 %v356, 0.054488685
        %v361 = vmul.f32 %v357, 0.054488685
        %v362 = vmul.f32 %v358, 0.054488685
        %v363 = vmul.f32 %v359, 0.054488685
        %v364 = vadd.f32 %v352, %v360
        %v365 = vadd.f32 %v353, %v361
        %v366 = vadd.f32 %v354, %v362
        %v367 = vadd.f32 %v355, %v363
        %368 = vst.msk [vmem:[#allocation3] sm:$0xff] %vm146, %v364
        %vm369 = vcmask 128000
        %370 = vst.msk [vmem:[#allocation3 + $0x8] sm:$0x3f] %vm369, %v365
        %371 = vst.msk [vmem:[#allocation3 + $0x10] sm:$0xff] %vm146, %v366
        %372 = vst.msk [vmem:[#allocation3 + $0x18] sm:$0x3f] %vm369, %v367
        %v373 = vld [vmem:[#allocation3 + $0x2] sm:$0xff]
        %v374 = vld [vmem:[#allocation3 + $0xa] sm:$0x3f]
        %v375 = vld [vmem:[#allocation3 + $0x12] sm:$0xff]
        %v376 = vld [vmem:[#allocation3 + $0x1a] sm:$0x3f]
        %v377 = vld [vmem:[#allocation2] sm:$0xff]
        %v378 = vld [vmem:[#allocation2 + $0x8] sm:$0x3f]
        %v379 = vld [vmem:[#allocation2 + $0x10] sm:$0xff]
        %v380 = vld [vmem:[#allocation2 + $0x18] sm:$0x3f]
        %v381 = vmul.f32 %v377, 0.054488685
        %v382 = vmul.f32 %v378, 0.054488685
        %v383 = vmul.f32 %v379, 0.054488685
        %v384 = vmul.f32 %v380, 0.054488685
        %v385 = vadd.f32 %v373, %v381
        %v386 = vadd.f32 %v374, %v382
        %v387 = vadd.f32 %v375, %v383
        %v388 = vadd.f32 %v376, %v384
        %389 = vst.msk [vmem:[#allocation3 + $0x2] sm:$0xff] %vm146, %v385
        %390 = vst.msk [vmem:[#allocation3 + $0xa] sm:$0x3f] %vm369, %v386
        %391 = vst.msk [vmem:[#allocation3 + $0x12] sm:$0xff] %vm146, %v387
        %392 = vst.msk [vmem:[#allocation3 + $0x1a] sm:$0x3f] %vm369, %v388
        %v393 = vld [vmem:[#allocation3] sm:$0xff]
        %v394 = vld [vmem:[#allocation3 + $0x8] sm:$0xff]
        %v395 = vld [vmem:[#allocation3 + $0x10] sm:$0xff]
        %v396 = vld [vmem:[#allocation3 + $0x18] sm:$0xff]
        %397 = vst.msk [vmem:[%s135] sm:$0xff] %vm146, %v393
        %398 = vst.msk [vmem:[%s135 + $0x8] sm:$0xff] %vm146, %v394
        %399 = vst.msk [vmem:[%s135 + $0x10] sm:$0xff] %vm146, %v395
        %400 = vst.msk [vmem:[%s135 + $0x18] sm:$0xff] %vm146, %v396
        %s401 = sand.u32 %s52, 1
        %s402 = scalar_lea.sflag [#allocation6], %s401
        %s403 = sand.u32 %s52, 1
        %s404 = smul.addr %s403, 32
        %s405 = scalar_lea.vmem [#allocation7], %s404
        // Predicated region
        $region29: #{tpu_custom_call.1} parent=23 // pred_check
          %p406 = pneg %p62
        $region30: #{tpu_custom_call.1} parent=23 // pred_check_branch
          %408 = sbr.rel (%p406) target = $region32
        $region31: #{tpu_custom_call.1} parent=23 // pred_region
          %s409 = smul.u32 2, %s18
          %s411 = ssub.s32 512, 512
          %412 = vsyncadd %s402, %s411
          %s413 = smul.addr %s409, 2
          %s414 = smul.addr %s413, 128
          %s415 = scalar_lea.hbm %s1, %s414
          %s416 = sshll.u32 %s405, 4
          %s417 = int_to_ptr.vmem [resolvable:$true] %s416
          %422 = dma.vmem_to_hbm [thread:$0]  %s417, 512, %s415, %s402, 128, 128, 8
        $region32: #{tpu_custom_call.1} parent=23 // pred_fallthru
          _
      $region24: #{tpu_custom_call.1} parent=5 // pred_fallthru
        _
      %p423 = scmp.le.s32.totalorder 2, %s13
      // Predicated region
      $region33: #{tpu_custom_call.1} parent=5 // pred_check
        %p424 = pneg %p423
      $region34: #{tpu_custom_call.1} parent=5 // pred_check_branch
        %426 = sbr.rel (%p424) target = $region36
      $region35: #{tpu_custom_call.1} parent=5 // pred_region
        %s427 = ssub.s32 %s13, 2
        // Predicated region
        $region37: #{tpu_custom_call.1} parent=35 // pred_check
          %p428 = pneg %p68
        $region38: #{tpu_custom_call.1} parent=35 // pred_check_branch
          %430 = sbr.rel (%p428) target = $region40
        $region39: #{tpu_custom_call.1} parent=35 // pred_region
          %s431 = sand.u32 %s53, 1
          %s432 = scalar_lea.sflag [#allocation6], %s431
          %s433 = sand.u32 %s53, 1
          %s434 = smul.addr %s433, 32
          %s435 = scalar_lea.vmem [#allocation7], %s434
          %436 = dma.done %s432, 512
        $region40: #{tpu_custom_call.1} parent=35 // pred_fallthru
          _
      $region36: #{tpu_custom_call.1} parent=5 // pred_fallthru
        _
    $region6: #{tpu_custom_call.1} parent=1 // loop_footer
      %s17 = sadd.s32 1, %s13
    $region7: #{tpu_custom_call.1} parent=1 // loop_footer_branch
      %12 = sbr.rel target = $region3
    $region8: #{tpu_custom_call.1} parent=1 // loop_exit
      _
    %437 = vsyncpa [#allocation5], 1
    %s438 = scalar_lea.sflag [#allocation5], 1
    %439 = vsyncpa %s438, 1
    %440 = vsyncpa [#allocation6], 1
    %s441 = scalar_lea.sflag [#allocation6], 1
    %442 = vsyncpa %s441, 1

</llo_original>
